<compile_context>
chip_gen: v5e
topology: v5e:2x2
jax: 0.10.0
libtpu: 0.0.40
codegen_flags: <defaults>
</compile_context>

<pallas_src>
import jax
import jax.numpy as jnp
from jax.experimental import pallas as pl
from jax.experimental.pallas import tpu as pltpu

LANE = 128      # vreg lane width: last block dim should be a multiple of this
SUBLANE = 8     # vreg sublanes: second-to-last block dim multiple


def _round_up(v, m):
    return (v + m - 1) // m * m


def _vmem_cap_bytes():
    """~85% of this device's physical VMEM (v5e/v6e: 128 MiB, v7x: 64 MiB)."""
    try:
        return int(0.85 * pltpu.get_tpu_info().vmem_capacity_bytes)
    except Exception:
        return 48 << 20  # conservative: safe on every TPU generation


# ----------------------------------------------------------------------------
# Kernel: y_tile = x_tile @ W_slab + b_slab     (single fused affine, no ReLU)
# ----------------------------------------------------------------------------
def mlp_affine_kernel(x_ref, w_ref, b_ref, o_ref):
    x = x_ref[...].astype(w_ref.dtype)                      # cast on-chip (VPU)
    acc = jnp.dot(x, w_ref[...], preferred_element_type=jnp.float32)  # MXU
    o_ref[...] = (acc + b_ref[...]).astype(o_ref.dtype)     # f32 bias add


# ----------------------------------------------------------------------------
# One-time parameter prep (model-load time, NOT per forward call)
# ----------------------------------------------------------------------------
def prepare_mlp_params(w1, b1, w2, b2, w3, b3, *, compute_dtype=jnp.bfloat16):
    """Fold the three PyTorch linears ([out,in] weights) into one affine.

    Returns (Wc, bc) with Wc: [H, Hp] (x @ Wc layout, output dim zero-padded to
    a multiple of 128 lanes, cast to compute_dtype) and bc: [1, Hp] f32.
    Zero padding keeps the padded output lanes exactly zero.
    """
    w1 = jnp.asarray(w1, jnp.float32); b1 = jnp.asarray(b1, jnp.float32)
    w2 = jnp.asarray(w2, jnp.float32); b2 = jnp.asarray(b2, jnp.float32)
    w3 = jnp.asarray(w3, jnp.float32); b3 = jnp.asarray(b3, jnp.float32)

    wc = w1.T @ w2.T @ w3.T                       # [H, H]   (y = x @ wc + bc)
    bc = (b1 @ w2.T + b2) @ w3.T + b3             # [H]

    H = wc.shape[0]
    Hp = _round_up(H, LANE)
    wp = jnp.zeros((H, Hp), compute_dtype).at[:, :H].set(wc.astype(compute_dtype))
    bp = jnp.zeros((1, Hp), jnp.float32).at[0, :H].set(bc)
    return wp, bp


# ----------------------------------------------------------------------------
# Forward wrapper
# ----------------------------------------------------------------------------
def mlp_layer(x, params, *, block_b=None):
    """x: [B, H]; params: output of prepare_mlp_params(). Returns [B, H]."""
    w, b = params
    H, Hp = w.shape
    B, Hx = x.shape
    assert Hx == H, f"hidden size mismatch: x has {Hx}, params expect {H}"
    out_dtype = x.dtype
    cdt = w.dtype

    # --- batch (M) tiling: one full tile up to 256 rows (full MXU M on
    #     v6e/v7x, and single-TC v5e/v6e prefer fewer/bigger grid steps);
    #     past that, 256-row tiles (sublane aligned) shard across v7x's TCs.
    if block_b is None:
        block_b = B if B <= 256 else 256
    if block_b >= B:
        block_b, B_pad = B, B
    else:
        block_b = max(SUBLANE, _round_up(block_b, SUBLANE))
        B_pad = _round_up(B, block_b)
    xp = x if B_pad == B else jnp.pad(x, ((0, B_pad - B), (0, 0)))

    # --- output-column (N) tiling: full Hp when small; otherwise the largest
    #     128-multiple divisor <= 512 so the weight slab stays a few MiB and
    #     its DMA overlaps MXU work (keeps the kernel viable on v7x at scale).
    if Hp <= 512:
        block_n = Hp
    else:
        block_n = 128
        for cand in (512, 384, 256):
            if Hp % cand == 0:
                block_n = cand
                break

    grid = (B_pad // block_b, Hp // block_n)

    # --- accurate per-step VMEM estimate (2 pipeline buffers per operand,
    #     plus the f32 dot temp), ~1.5x headroom, clamped to device VMEM.
    xsz = jnp.dtype(x.dtype).itemsize
    csz = jnp.dtype(cdt).itemsize
    osz = jnp.dtype(out_dtype).itemsize
    est = (2 * block_b * H * xsz            # x tile buffers
           + 2 * H * block_n * csz          # weight slab buffers
           + 2 * block_n * 4                # bias slab buffers
           + 2 * block_b * block_n * osz    # output tile buffers
           + 2 * block_b * block_n * 4)     # f32 dot result / compiler temps
    vmem_limit = int(min(max(int(1.5 * est), 8 << 20), _vmem_cap_bytes()))

    cost = pl.CostEstimate(
        flops=int(2 * B_pad * H * Hp),
        transcendentals=0,
        bytes_accessed=int(B_pad * H * xsz + H * Hp * csz + Hp * 4
                           + B_pad * Hp * osz),
    )

    out_p = pl.pallas_call(
        mlp_affine_kernel,
        out_shape=jax.ShapeDtypeStruct((B_pad, Hp), out_dtype),
        grid=grid,
        in_specs=[
            pl.BlockSpec((block_b, H), lambda i, j: (i, 0)),    # x tile
            pl.BlockSpec((H, block_n), lambda i, j: (0, j)),    # fused weight slab
            pl.BlockSpec((1, block_n), lambda i, j: (0, j)),    # fused bias slab
        ],
        out_specs=pl.BlockSpec((block_b, block_n), lambda i, j: (i, j)),
        compiler_params=pltpu.CompilerParams(
            dimension_semantics=("parallel", "parallel"),
            vmem_limit_bytes=vmem_limit),
        cost_estimate=cost,
    )(xp, w, b)

    return out_p[:B, :H]


# ----------------------------------------------------------------------------
# Reference / init helpers
# ----------------------------------------------------------------------------
def init_linear(key, fan_in, fan_out, dtype=jnp.float32):
    """PyTorch nn.Linear default init: uniform(+-1/sqrt(fan_in)); weight [out, in]."""
    kw, kb = jax.random.split(key)
    bound = 1.0 / jnp.sqrt(jnp.asarray(fan_in, dtype))
    w = jax.random.uniform(kw, (fan_out, fan_in), dtype, -bound, bound)
    b = jax.random.uniform(kb, (fan_out,), dtype, -bound, bound)
    return w, b


def mlp_reference(x, w1, b1, w2, b2, w3, b3):
    h = x @ w1.T + b1            # ReLU result discarded in the PyTorch module
    h = h @ w2.T + b2            # ReLU result discarded in the PyTorch module
    return h @ w3.T + b3


if __name__ == "__main__":
    key = jax.random.PRNGKey(0)

    # ---- shipped size: B=8 CLS features, hidden_size=32 ----------------------
    B, H = 8, 32
    kx, k1, k2, k3, k5 = jax.random.split(key, 5)
    x = jax.random.normal(kx, (B, H), jnp.float32)
    w1, b1 = init_linear(k1, H, H)
    w2, b2 = init_linear(k2, H, H)
    w3, b3 = init_linear(k3, H, H)
    ref = mlp_reference(x, w1, b1, w2, b2, w3, b3)

    # bf16 fused-affine path (default: halves weight DMA bytes on every chip)
    params_bf16 = prepare_mlp_params(w1, b1, w2, b2, w3, b3,
                                     compute_dtype=jnp.bfloat16)
    out_bf16 = jax.block_until_ready(mlp_layer(x, params_bf16))
    assert out_bf16.shape == (B, H)
    assert jnp.allclose(out_bf16, ref, atol=2e-2, rtol=2e-2), "bf16 mismatch"

    # f32 fused-affine path (near-exact; fold reorders rounding slightly)
    params_f32 = prepare_mlp_params(w1, b1, w2, b2, w3, b3,
                                    compute_dtype=jnp.float32)
    out_f32 = jax.block_until_ready(mlp_layer(x, params_f32))
    assert out_f32.shape == (B, H)
    assert jnp.allclose(out_f32, ref, atol=1e-4, rtol=1e-4), "f32 mismatch"

    # ---- larger shape: exercises batch tiling (B>256) and the N grid axis ----
    B2, H2 = 272, 640
    kx2, k4, k6, k7 = jax.random.split(k5, 4)
    x2 = jax.random.normal(kx2, (B2, H2), jnp.float32)
    v1, c1 = init_linear(k4, H2, H2)
    v2, c2 = init_linear(k6, H2, H2)
    v3, c3 = init_linear(k7, H2, H2)
    ref2 = mlp_reference(x2, v1, c1, v2, c2, v3, c3)
    params2 = prepare_mlp_params(v1, c1, v2, c2, v3, c3,
                                 compute_dtype=jnp.bfloat16)
    out2 = jax.block_until_ready(mlp_layer(x2, params2))
    assert out2.shape == (B2, H2)
    assert jnp.allclose(out2, ref2, atol=2e-2, rtol=3e-2), "tiled bf16 mismatch"

    print("KERNEL_OK")
</pallas_src>

<mosaic_0001>
module attributes {stable_mosaic.version = 11 : i64} {
  func.func @mlp_affine_kernel(%arg0: i32, %arg1: i32, %arg2: memref<8x32xf32, #tpu.memory_space<vmem>>, %arg3: memref<32x128xbf16, #tpu.memory_space<vmem>>, %arg4: memref<1x128xf32, #tpu.memory_space<vmem>>, %arg5: memref<8x128xf32, #tpu.memory_space<vmem>>) attributes {dimension_semantics = [#tpu.dimension_semantics<parallel>, #tpu.dimension_semantics<parallel>], iteration_bounds = array<i64: 1, 1>, scalar_prefetch = 0 : i64, scratch_operands = 0 : i64, tpu.core_type = #tpu.core_type<tc>, window_params = [{transform_indices = @transform_0, window_bounds = array<i64: 8, 32>}, {transform_indices = @transform_1, window_bounds = array<i64: 32, 128>}, {transform_indices = @transform_2, window_bounds = array<i64: 1, 128>}, {transform_indices = @transform_3, window_bounds = array<i64: 8, 128>}]} {
    %c0 = arith.constant 0 : index
    %c0_0 = arith.constant 0 : index
    %0 = vector.load %arg2[%c0, %c0_0] : memref<8x32xf32, #tpu.memory_space<vmem>>, vector<8x32xf32>
    %1 = arith.truncf %0 : vector<8x32xf32> to vector<8x32xbf16>
    %c0_1 = arith.constant 0 : index
    %c0_2 = arith.constant 0 : index
    %2 = vector.load %arg3[%c0_1, %c0_2] : memref<32x128xbf16, #tpu.memory_space<vmem>>, vector<32x128xbf16>
    %cst = arith.constant dense<0.000000e+00> : vector<8x128xf32>
    %3 = tpu.matmul %1, %2, %cst {dimension_numbers = #tpu.dot_dimension_numbers<[1], [0], [0], [1], [0, 0, 1, 1], [], []>} : vector<8x32xbf16>, vector<32x128xbf16>, vector<8x128xf32> -> vector<8x128xf32>
    %c0_3 = arith.constant 0 : index
    %c0_4 = arith.constant 0 : index
    %4 = vector.load %arg4[%c0_3, %c0_4] : memref<1x128xf32, #tpu.memory_space<vmem>>, vector<1x128xf32>
    %5 = vector.broadcast %4 : vector<1x128xf32> to vector<8x128xf32>
    %6 = arith.addf %3, %5 : vector<8x128xf32>
    %c0_5 = arith.constant 0 : index
    %c0_6 = arith.constant 0 : index
    %7 = vector.load %arg5[%c0_5, %c0_6] : memref<8x128xf32, #tpu.memory_space<vmem>>, vector<8x128xf32>
    tpu.vector_store %arg5[%c0_5, %c0_6], %6 {strides = array<i32>} : memref<8x128xf32, #tpu.memory_space<vmem>>, vector<8x128xf32>,
    return
  }
  func.func @transform_0(%arg0: i32, %arg1: i32) -> (i32, i32) {
    %c0_i32 = arith.constant 0 : i32
    %c0_i32_0 = arith.constant 0 : i32
    return %arg0, %c0_i32 : i32, i32
  }
  func.func @transform_1(%arg0: i32, %arg1: i32) -> (i32, i32) {
    %c0_i32 = arith.constant 0 : i32
    %c0_i32_0 = arith.constant 0 : i32
    return %c0_i32, %arg1 : i32, i32
  }
  func.func @transform_2(%arg0: i32, %arg1: i32) -> (i32, i32) {
    %c0_i32 = arith.constant 0 : i32
    %c0_i32_0 = arith.constant 0 : i32
    return %c0_i32, %arg1 : i32, i32
  }
  func.func @transform_3(%arg0: i32, %arg1: i32) -> (i32, i32) {
    %c0_i32 = arith.constant 0 : i32
    return %arg0, %arg1 : i32, i32
  }
}

</mosaic_0001>

<llo_original>
// kernel: tpu_custom_call.1
$region0: #{tpu_custom_call.1}
  #allocation0 [shape = 'u32[]', space=smem, size = 0x4, offset = 0x4, fixed_abs, tag = 'smem constant byte address 0x4 - core index']
  #allocation1 [shape = 'u32[72,128]{1,0:T(1,128)}', space=vmem, size = 0x9000, scoped, tag = 'internal scratch']
  %s0 = inlined_call_operand.hbm [shape: f32[8,32], index: 0, kind: input, shape index: {}]
  %s1 = inlined_call_operand.hbm [shape: bf16[32,128], index: 1, kind: input, shape index: {}]
  %s2 = inlined_call_operand.vmem [shape: f32[1,128], index: 2, kind: input, shape index: {}]
  %s3 = inlined_call_operand.hbm [shape: f32[8,128], index: 3, kind: output, shape index: {}]
  %s4 = sld [smem:[#allocation0]]
  $region30: #{tpu_custom_call.1} parent=0
    _
  %s6 = ssub.s32 1, %s4
  %s7 = scalar_select 0, %s6, %s4
  $region1: #{tpu_custom_call.1} parent=0
    #allocation2 [shape = 'u8[4096]{0}', space=vmem, size = 0x1000, scoped, tag = 'input window, operand 0, single buffered']
    #allocation3 [shape = 's32[1]{0}', space=sflag, size = 0x4, scoped, tag = 'scoped memory for tpu_custom_call.1']
    #allocation4 [shape = 's32[1]{0}', space=sflag, size = 0x4, scoped, tag = 'scoped memory for tpu_custom_call.1']
    #allocation5 [shape = 'u8[8192]{0}', space=vmem, size = 0x2000, scoped, tag = 'input window, operand 1, single buffered']
    #allocation6 [shape = 's32[1]{0}', space=sflag, size = 0x4, scoped, tag = 'scoped memory for tpu_custom_call.1']
    #allocation7 [shape = 'u8[4096]{0}', space=vmem, size = 0x1000, scoped, tag = 'output window, operand 0, single buffered']
    %8 = vsyncpa [#allocation3], 0
    %9 = vsyncpa [#allocation6], 0
    %10 = vsyncpa [#allocation4], 0
    // Predicated region
    $region2: #{tpu_custom_call.1} parent=1 // pred_check
      _
    $region3: #{tpu_custom_call.1} parent=1 // pred_check_branch
      %12 = sbr.rel (0) target = $region5
    $region4: #{tpu_custom_call.1} parent=1 // pred_region
      %14 = vsyncadd [#allocation3], 0
      %s16 = sshll.u32 %s0, 4
      %s17 = int_to_ptr.hbm [resolvable:$true] %s16
      %s18 = sshll.u32 [#allocation2], 4
      %s19 = int_to_ptr.vmem [resolvable:$true] %s18
      %21 = dma.hbm_to_vmem [thread:$0]  %s17, 128, %s19, [#allocation3]
    $region5: #{tpu_custom_call.1} parent=1 // pred_fallthru
      _
    // Predicated region
    $region6: #{tpu_custom_call.1} parent=1 // pred_check
      _
    $region7: #{tpu_custom_call.1} parent=1 // pred_check_branch
      %23 = sbr.rel (0) target = $region9
    $region8: #{tpu_custom_call.1} parent=1 // pred_region
      %25 = vsyncadd [#allocation6], 0
      %s26 = sshll.u32 %s1, 4
      %s27 = int_to_ptr.hbm [resolvable:$true] %s26
      %s28 = sshll.u32 [#allocation5], 4
      %s29 = int_to_ptr.vmem [resolvable:$true] %s28
      %34 = dma.hbm_to_vmem [thread:$0]  %s27, 256, %s29, [#allocation6], 64, 64, 4
    $region9: #{tpu_custom_call.1} parent=1 // pred_fallthru
      _
    // Predicated region
    $region10: #{tpu_custom_call.1} parent=1 // pred_check
      _
    $region11: #{tpu_custom_call.1} parent=1 // pred_check_branch
      %36 = sbr.rel (0) target = $region13
    $region12: #{tpu_custom_call.1} parent=1 // pred_region
      _
    $region13: #{tpu_custom_call.1} parent=1 // pred_fallthru
      _
    // Predicated region
    $region14: #{tpu_custom_call.1} parent=1 // pred_check
      _
    $region15: #{tpu_custom_call.1} parent=1 // pred_check_branch
      %38 = sbr.rel (0) target = $region17
    $region16: #{tpu_custom_call.1} parent=1 // pred_region
      %40 = dma.done [#allocation3], 128
    $region17: #{tpu_custom_call.1} parent=1 // pred_fallthru
      _
    // Predicated region
    $region18: #{tpu_custom_call.1} parent=1 // pred_check
      _
    $region19: #{tpu_custom_call.1} parent=1 // pred_check_branch
      %42 = sbr.rel (0) target = $region21
    $region20: #{tpu_custom_call.1} parent=1 // pred_region
      %44 = dma.done [#allocation6], 256
    $region21: #{tpu_custom_call.1} parent=1 // pred_fallthru
      _
    %v46 = vld [vmem:[#allocation2] sm:$0xff]
    %v47 = vpack.c.bf16 %v46, %v46
    %v48 = vld [vmem:[#allocation5] sm:$0xf]
    %v49 = vld [vmem:[#allocation5 + $0x4] sm:$0xf]
    %v50 = vld [vmem:[#allocation5 + $0x8] sm:$0xf]
    %v51 = vld [vmem:[#allocation5 + $0xc] sm:$0xf]
    %v52 = vld [vmem:[%s2] sm:$0x1]
    %v54 = vperm.slane %v52, 0
    %v60 = vunpack.c.l.b16 %v48
    %v61 = vunpack.c.l.b16 %v49
    %v62 = vunpack.c.l.b16 %v50
    %v63 = vunpack.c.l.b16 %v51
    %v64 = vpack.c.b16 %v61, %v60
    %v65 = vpack.c.b16 %v63, %v62
    %vm68 = vcmask 261120
    %v70 = vsel %vm68, %v47, 0
    %72 = vmatpush.bf16.msra.mxu0 0
    %73 = vmatpush.bf16.msra.mxu0 0
    %74 = vmatpush.bf16.msra.mxu0 0
    %75 = vmatpush.bf16.msra.mxu0 0
    %76 = vmatpush.bf16.msra.mxu0 0
    %77 = vmatpush.bf16.msra.mxu0 0
    %78 = vmatpush.bf16.msra.mxu0 %v65
    %79 = vmatpush.bf16.msra.mxu0 %v64
    %80 = vmatmul.bf16.gmra.mxu0 %v70
    %v81 = vpop.f32.mrf.mxu0
    %v82 = vadd.f32 %v54, %v81
    %v83 = vpop.f32.mrf.mxu0
    %84 = vdwg.mxu0
    %85 = vst [vmem:[#allocation7] sm:$0xff] %v82
    // Predicated region
    $region22: #{tpu_custom_call.1} parent=1 // pred_check
      _
    $region23: #{tpu_custom_call.1} parent=1 // pred_check_branch
      %87 = sbr.rel (0) target = $region25
    $region24: #{tpu_custom_call.1} parent=1 // pred_region
      %89 = vsyncadd [#allocation4], 0
      %s91 = sshll.u32 [#allocation7], 4
      %s92 = int_to_ptr.vmem [resolvable:$true] %s91
      %s93 = sshll.u32 %s3, 4
      %s94 = int_to_ptr.hbm [resolvable:$true] %s93
      %96 = dma.vmem_to_hbm [thread:$0]  %s92, 128, %s94, [#allocation4]
    $region25: #{tpu_custom_call.1} parent=1 // pred_fallthru
      _
    // Predicated region
    $region26: #{tpu_custom_call.1} parent=1 // pred_check
      _
    $region27: #{tpu_custom_call.1} parent=1 // pred_check_branch
      %98 = sbr.rel (0) target = $region29
    $region28: #{tpu_custom_call.1} parent=1 // pred_region
      %100 = dma.done [#allocation4], 128
    $region29: #{tpu_custom_call.1} parent=1 // pred_fallthru
      _
    %101 = vsyncpa [#allocation3], 1
    %102 = vsyncpa [#allocation6], 1
    %103 = vsyncpa [#allocation4], 1

</llo_original>
